<compile_context>
chip_gen: v7x
topology: tpu7x:2x2x1
jax: 0.10.0
libtpu: 0.0.40
codegen_flags: <defaults>
</compile_context>

<pallas_src>
import numpy as np
import jax
import jax.numpy as jnp
from jax.experimental import pallas as pl
from jax.experimental.pallas import tpu as pltpu

# ----------------------- model hyper-parameters (small) -----------------------
FIELD_DIMS = (3, 4, 5, 6, 7, 8)      # num_fields = 6
EMBED_DIM = 32
MLP_DIMS = (64, 32)
DROPOUT = 0.2                        # eval mode -> identity
BATCH = 2
BN_EPS = 1e-5

NUM_FIELDS = len(FIELD_DIMS)
NUM_PAIRS = NUM_FIELDS * (NUM_FIELDS - 1) // 2
TOTAL_DIM = sum(FIELD_DIMS)


# --------------------------------- kernel ------------------------------------
def nffm_kernel(a_ref, b_ref, lin_ref, w1_ref, b1_ref, w2_ref, b2_ref, w3r_ref,
                out_ref):
    n = a_ref.shape[0]          # B * P rows
    bsz = lin_ref.shape[0]      # batch size
    p = n // bsz                # pairs per batch row

    # Field-aware pairwise interactions: xs[j][:, i] * xs[i][:, j]   -> (N, E)
    embed = a_ref[...] * b_ref[...]

    # MLP over flattened interactions (BN already folded into w/b; dropout is
    # identity in eval mode).  f32 accumulation on the MXU.
    h = jnp.dot(embed, w1_ref[...], preferred_element_type=jnp.float32) + b1_ref[...]
    h = jnp.maximum(h, 0.0)
    h = jnp.dot(h, w2_ref[...], preferred_element_type=jnp.float32) + b2_ref[...]
    h = jnp.maximum(h, 0.0)
    # final Linear(H2 -> 1): lane-broadcast multiply + lane reduce (bias folded
    # on the host into the linear operand).
    fi = jnp.sum(h * w3r_ref[...], axis=1, keepdims=True)            # (N, 1)

    # ffm_term per row: lane reduce only (no MXU, no dense group matrix).
    rs = jnp.sum(embed, axis=1, keepdims=True)                       # (N, 1)
    # FeaturesLinear: sum of 1-d embeddings (global bias + P*b3 pre-folded in).
    lin = jnp.sum(lin_ref[...], axis=1, keepdims=True)               # (B, 1)

    # Per-batch grouping of the N = B*P rows + the (B,1)+(1,B) broadcast,
    # done with tiny iota masks instead of (B,N)/(N,B) group matrices.
    rowid = jax.lax.broadcasted_iota(jnp.int32, (n, 1), 0)           # (N, 1)
    bid = jax.lax.broadcasted_iota(jnp.int32, (bsz, 1), 0)           # (B, 1)
    rid = jax.lax.broadcasted_iota(jnp.int32, (bsz, bsz), 0)         # (B, B)
    cid = jax.lax.broadcasted_iota(jnp.int32, (bsz, bsz), 1)         # (B, B)

    logits = jnp.zeros((bsz, bsz), jnp.float32)
    for bi in range(bsz):                                            # static, tiny unroll
        grp = (rowid >= bi * p) & (rowid < (bi + 1) * p)             # rows of batch bi
        ffm_b = jnp.sum(jnp.where(grp, rs, 0.0), keepdims=True)      # (1, 1)
        fi_b = jnp.sum(jnp.where(grp, fi, 0.0), keepdims=True)       # (1, 1)
        lin_b = jnp.sum(jnp.where(bid == bi, lin, 0.0), keepdims=True)
        col_b = lin_b + ffm_b                                        # row term of batch bi
        logits = (logits
                  + jnp.where(rid == bi, col_b, 0.0)                 # (B,1)-style broadcast
                  + jnp.where(cid == bi, fi_b, 0.0))                 # (1,B)-style broadcast

    # torch: sigmoid(linear(x) + ffm_term + sum(feature_interaction.view(-1,P),1))
    out_ref[...] = jax.nn.sigmoid(logits)


# --------------------------------- wrapper -----------------------------------
def nffm_forward(x, params):
    B, F = x.shape
    E = EMBED_DIM
    P = NUM_PAIRS
    N = B * P

    offsets = jnp.asarray(
        np.concatenate([[0], np.cumsum(FIELD_DIMS)[:-1]]).astype(np.int32))
    idx = x + offsets[None, :]                                   # (B, F) int32

    # Gather ONLY the 2*P embedding rows actually used (instead of a full
    # (F, B, F, E) take).  Pair order matches the torch double loop.
    pairs = [(i, j) for i in range(F - 1) for j in range(i + 1, F)]
    ii = jnp.asarray([pr[0] for pr in pairs], jnp.int32)         # (P,)
    jj = jnp.asarray([pr[1] for pr in pairs], jnp.int32)         # (P,)
    a3 = params["ffm_emb"][jj[None, :], idx[:, ii], :]           # xs[j][:, i] -> (B, P, E)
    b3 = params["ffm_emb"][ii[None, :], idx[:, jj], :]           # xs[i][:, j] -> (B, P, E)
    a2 = a3.reshape(N, E)
    b2 = b3.reshape(N, E)

    lin_e = jnp.take(params["lin_emb"][:, 0], idx, axis=0)       # (B, F)

    # Fold eval-mode BatchNorm into the MLP weights/biases (exact equivalence).
    s1 = params["bn1_gamma"] / jnp.sqrt(params["bn1_var"] + BN_EPS)
    w1f = params["w1"] * s1
    b1f = params["b1"] * s1 + (params["bn1_beta"] - params["bn1_mean"] * s1)
    s2 = params["bn2_gamma"] / jnp.sqrt(params["bn2_var"] + BN_EPS)
    w2f = params["w2"] * s2
    b2f = params["b2"] * s2 + (params["bn2_beta"] - params["bn2_mean"] * s2)

    # Fold the two remaining scalar biases: linear bias, and the final MLP bias
    # which contributes P*b3 to every logit.  Both are constants added to every
    # output entry, so add them once into the linear-embedding operand.
    gbias = params["lin_bias"][0, 0] + P * params["b3"][0, 0]
    lin_adj = lin_e.at[:, 0].add(gbias)

    w3r = params["w3"].T                                         # (1, H2)

    operands = (a2, b2, lin_adj, w1f, b1f, w2f, b2f, w3r)

    vmem = pl.BlockSpec(memory_space=pltpu.MemorySpace.VMEM)
    out = pl.pallas_call(
        nffm_kernel,
        out_shape=jax.ShapeDtypeStruct((B, B), jnp.float32),
        in_specs=[vmem] * len(operands),
        out_specs=vmem,
        # NOTE: at N=30 rows there is nothing to tile; with a real batch, add an
        # N-tiled grid ("parallel"), bf16 matmul operands (v6e/v7x) and size tiles
        # for v7x's 64 MiB VMEM.
    )(*operands)
    return out, (a3, b3, lin_e)


# ------------------------- pure-JAX reference (check) -------------------------
def ref_forward(a3, b3, lin_e, params):
    embed_xs = a3 * b3                                            # (B, P, E)
    B, P, E = embed_xs.shape
    ffm_term = jnp.sum(jnp.sum(embed_xs, axis=1), axis=1, keepdims=True)   # (B, 1)
    s1 = params["bn1_gamma"] / jnp.sqrt(params["bn1_var"] + BN_EPS)
    sh1 = params["bn1_beta"] - params["bn1_mean"] * s1
    s2 = params["bn2_gamma"] / jnp.sqrt(params["bn2_var"] + BN_EPS)
    sh2 = params["bn2_beta"] - params["bn2_mean"] * s2
    h = embed_xs.reshape(-1, E)                                   # (B*P, E)
    h = h @ params["w1"] + params["b1"]
    h = jnp.maximum(h * s1 + sh1, 0.0)
    h = h @ params["w2"] + params["b2"]
    h = jnp.maximum(h * s2 + sh2, 0.0)
    fi = h @ params["w3"] + params["b3"]                          # (B*P, 1)
    lin = jnp.sum(lin_e, axis=1, keepdims=True) + params["lin_bias"]       # (B, 1)
    out = lin + ffm_term + jnp.sum(fi.reshape(-1, P), axis=1)     # (B,1)+(B,) -> (B,B)
    if out.shape[1] == 1:                                         # torch x.squeeze(1)
        out = jnp.squeeze(out, axis=1)
    return jax.nn.sigmoid(out)


# ----------------------------------- main -------------------------------------
if __name__ == "__main__":
    key = jax.random.PRNGKey(0)
    ks = jax.random.split(key, 32)

    params = {
        "ffm_emb": 0.1 * jax.random.normal(ks[0], (NUM_FIELDS, TOTAL_DIM, EMBED_DIM), jnp.float32),
        "lin_emb": 0.1 * jax.random.normal(ks[1], (TOTAL_DIM, 1), jnp.float32),
        "lin_bias": jnp.full((1, 1), 0.1, jnp.float32),
        "w1": 0.1 * jax.random.normal(ks[2], (EMBED_DIM, MLP_DIMS[0]), jnp.float32),
        "b1": 0.1 * jax.random.normal(ks[3], (1, MLP_DIMS[0]), jnp.float32),
        "w2": 0.1 * jax.random.normal(ks[4], (MLP_DIMS[0], MLP_DIMS[1]), jnp.float32),
        "b2": 0.1 * jax.random.normal(ks[5], (1, MLP_DIMS[1]), jnp.float32),
        "w3": 0.1 * jax.random.normal(ks[6], (MLP_DIMS[1], 1), jnp.float32),
        "b3": 0.1 * jax.random.normal(ks[7], (1, 1), jnp.float32),
        "bn1_gamma": jax.random.uniform(ks[8], (1, MLP_DIMS[0]), jnp.float32, 0.5, 1.5),
        "bn1_beta": 0.1 * jax.random.normal(ks[9], (1, MLP_DIMS[0]), jnp.float32),
        "bn1_mean": 0.1 * jax.random.normal(ks[10], (1, MLP_DIMS[0]), jnp.float32),
        "bn1_var": jax.random.uniform(ks[11], (1, MLP_DIMS[0]), jnp.float32, 0.5, 1.5),
        "bn2_gamma": jax.random.uniform(ks[12], (1, MLP_DIMS[1]), jnp.float32, 0.5, 1.5),
        "bn2_beta": 0.1 * jax.random.normal(ks[13], (1, MLP_DIMS[1]), jnp.float32),
        "bn2_mean": 0.1 * jax.random.normal(ks[14], (1, MLP_DIMS[1]), jnp.float32),
        "bn2_var": jax.random.uniform(ks[15], (1, MLP_DIMS[1]), jnp.float32, 0.5, 1.5),
    }

    # x: Long tensor of size (batch_size, num_fields), each entry in [0, field_dims[f])
    cols = [jax.random.randint(ks[16 + f], (BATCH,), 0, FIELD_DIMS[f], jnp.int32)
            for f in range(NUM_FIELDS)]
    x = jnp.stack(cols, axis=1)

    out, aux = nffm_forward(x, params)
    out = jax.block_until_ready(out)

    ref = ref_forward(*aux, params)
    if not np.allclose(np.asarray(out), np.asarray(ref), atol=1e-5, rtol=1e-5):
        raise AssertionError("Pallas kernel output mismatch vs reference")

    print("KERNEL_OK")
</pallas_src>

<mosaic_0001>
module attributes {stable_mosaic.version = 11 : i64} {
  func.func @nffm_kernel(%arg0: memref<30x32xf32, #tpu.memory_space<vmem>>, %arg1: memref<30x32xf32, #tpu.memory_space<vmem>>, %arg2: memref<2x6xf32, #tpu.memory_space<vmem>>, %arg3: memref<32x64xf32, #tpu.memory_space<vmem>>, %arg4: memref<1x64xf32, #tpu.memory_space<vmem>>, %arg5: memref<64x32xf32, #tpu.memory_space<vmem>>, %arg6: memref<1x32xf32, #tpu.memory_space<vmem>>, %arg7: memref<1x32xf32, #tpu.memory_space<vmem>>, %arg8: memref<2x2xf32, #tpu.memory_space<vmem>>) attributes {dimension_semantics = [], scalar_prefetch = 0 : i64, scratch_operands = 0 : i64, tpu.core_type = #tpu.core_type<tc>} {
    %c0 = arith.constant 0 : index
    %c0_0 = arith.constant 0 : index
    %0 = vector.load %arg0[%c0, %c0_0] : memref<30x32xf32, #tpu.memory_space<vmem>>, vector<30x32xf32>
    %c0_1 = arith.constant 0 : index
    %c0_2 = arith.constant 0 : index
    %1 = vector.load %arg1[%c0_1, %c0_2] : memref<30x32xf32, #tpu.memory_space<vmem>>, vector<30x32xf32>
    %2 = arith.mulf %0, %1 : vector<30x32xf32>
    %c0_3 = arith.constant 0 : index
    %c0_4 = arith.constant 0 : index
    %3 = vector.load %arg3[%c0_3, %c0_4] : memref<32x64xf32, #tpu.memory_space<vmem>>, vector<32x64xf32>
    %cst = arith.constant dense<0.000000e+00> : vector<30x64xf32>
    %4 = tpu.matmul %2, %3, %cst {dimension_numbers = #tpu.dot_dimension_numbers<[1], [0], [0], [1], [0, 0, 1, 1], [], []>} : vector<30x32xf32>, vector<32x64xf32>, vector<30x64xf32> -> vector<30x64xf32>
    %c0_5 = arith.constant 0 : index
    %c0_6 = arith.constant 0 : index
    %5 = vector.load %arg4[%c0_5, %c0_6] : memref<1x64xf32, #tpu.memory_space<vmem>>, vector<1x64xf32>
    %6 = vector.broadcast %5 : vector<1x64xf32> to vector<30x64xf32>
    %7 = arith.addf %4, %6 : vector<30x64xf32>
    %cst_7 = arith.constant 0.000000e+00 : f32
    %8 = vector.broadcast %cst_7 : f32 to vector<30x64xf32>
    %9 = arith.maximumf %7, %8 : vector<30x64xf32>
    %c0_8 = arith.constant 0 : index
    %c0_9 = arith.constant 0 : index
    %10 = vector.load %arg5[%c0_8, %c0_9] : memref<64x32xf32, #tpu.memory_space<vmem>>, vector<64x32xf32>
    %cst_10 = arith.constant dense<0.000000e+00> : vector<30x32xf32>
    %11 = tpu.matmul %9, %10, %cst_10 {dimension_numbers = #tpu.dot_dimension_numbers<[1], [0], [0], [1], [0, 0, 1, 1], [], []>} : vector<30x64xf32>, vector<64x32xf32>, vector<30x32xf32> -> vector<30x32xf32>
    %c0_11 = arith.constant 0 : index
    %c0_12 = arith.constant 0 : index
    %12 = vector.load %arg6[%c0_11, %c0_12] : memref<1x32xf32, #tpu.memory_space<vmem>>, vector<1x32xf32>
    %13 = vector.broadcast %12 : vector<1x32xf32> to vector<30x32xf32>
    %14 = arith.addf %11, %13 : vector<30x32xf32>
    %cst_13 = arith.constant 0.000000e+00 : f32
    %15 = vector.broadcast %cst_13 : f32 to vector<30x32xf32>
    %16 = arith.maximumf %14, %15 : vector<30x32xf32>
    %c0_14 = arith.constant 0 : index
    %c0_15 = arith.constant 0 : index
    %17 = vector.load %arg7[%c0_14, %c0_15] : memref<1x32xf32, #tpu.memory_space<vmem>>, vector<1x32xf32>
    %18 = vector.broadcast %17 : vector<1x32xf32> to vector<30x32xf32>
    %19 = arith.mulf %16, %18 : vector<30x32xf32>
    %cst_16 = arith.constant dense<0.000000e+00> : vector<30xf32>
    %20 = vector.multi_reduction <add>, %19, %cst_16 [1] : vector<30x32xf32> to vector<30xf32>
    %21 = vector.shape_cast %20 : vector<30xf32> to vector<30x1xf32>
    %cst_17 = arith.constant dense<0.000000e+00> : vector<30xf32>
    %22 = vector.multi_reduction <add>, %2, %cst_17 [1] : vector<30x32xf32> to vector<30xf32>
    %23 = vector.shape_cast %22 : vector<30xf32> to vector<30x1xf32>
    %c0_18 = arith.constant 0 : index
    %c0_19 = arith.constant 0 : index
    %24 = vector.load %arg2[%c0_18, %c0_19] : memref<2x6xf32, #tpu.memory_space<vmem>>, vector<2x6xf32>
    %cst_20 = arith.constant dense<0.000000e+00> : vector<2xf32>
    %25 = vector.multi_reduction <add>, %24, %cst_20 [1] : vector<2x6xf32> to vector<2xf32>
    %26 = vector.shape_cast %25 : vector<2xf32> to vector<2x1xf32>
    %27 = tpu.iota {dimensions = array<i32: 0>} : vector<30x1xi32>
    %28 = tpu.iota {dimensions = array<i32: 0>} : vector<2x1xi32>
    %29 = tpu.iota {dimensions = array<i32: 0>} : vector<2x2xi32>
    %30 = tpu.iota {dimensions = array<i32: 1>} : vector<2x2xi32>
    %cst_21 = arith.constant 0.000000e+00 : f32
    %31 = vector.broadcast %cst_21 : f32 to vector<2x2xf32>
    %c0_i32 = arith.constant 0 : i32
    %32 = vector.broadcast %c0_i32 : i32 to vector<30x1xi32>
    %33 = arith.cmpi sge, %27, %32 : vector<30x1xi32>
    %c15_i32 = arith.constant 15 : i32
    %34 = vector.broadcast %c15_i32 : i32 to vector<30x1xi32>
    %35 = arith.cmpi slt, %27, %34 : vector<30x1xi32>
    %36 = arith.andi %33, %35 : vector<30x1xi1>
    %cst_22 = arith.constant 0.000000e+00 : f32
    %37 = vector.broadcast %cst_22 : f32 to vector<30x1xf32>
    %38 = arith.select %36, %23, %37 : vector<30x1xi1>, vector<30x1xf32>
    %39 = vector.shape_cast %38 : vector<30x1xf32> to vector<1x30x1xf32>
    %cst_23 = arith.constant dense<0.000000e+00> : vector<1xf32>
    %40 = vector.multi_reduction <add>, %39, %cst_23 [1, 2] : vector<1x30x1xf32> to vector<1xf32>
    %41 = vector.shape_cast %40 : vector<1xf32> to vector<1x1x1xf32>
    %42 = vector.extract %41[0, 0, 0] : f32 from vector<1x1x1xf32>
    %43 = vector.broadcast %42 : f32 to vector<1x1xf32>
    %cst_24 = arith.constant 0.000000e+00 : f32
    %44 = vector.broadcast %cst_24 : f32 to vector<30x1xf32>
    %45 = arith.select %36, %21, %44 : vector<30x1xi1>, vector<30x1xf32>
    %46 = vector.shape_cast %45 : vector<30x1xf32> to vector<1x30x1xf32>
    %cst_25 = arith.constant dense<0.000000e+00> : vector<1xf32>
    %47 = vector.multi_reduction <add>, %46, %cst_25 [1, 2] : vector<1x30x1xf32> to vector<1xf32>
    %48 = vector.shape_cast %47 : vector<1xf32> to vector<1x1x1xf32>
    %49 = vector.extract %48[0, 0, 0] : f32 from vector<1x1x1xf32>
    %50 = vector.broadcast %49 : f32 to vector<1x1xf32>
    %c0_i32_26 = arith.constant 0 : i32
    %51 = vector.broadcast %c0_i32_26 : i32 to vector<2x1xi32>
    %52 = arith.cmpi eq, %28, %51 : vector<2x1xi32>
    %cst_27 = arith.constant 0.000000e+00 : f32
    %53 = vector.broadcast %cst_27 : f32 to vector<2x1xf32>
    %54 = arith.select %52, %26, %53 : vector<2x1xi1>, vector<2x1xf32>
    %55 = vector.shape_cast %54 : vector<2x1xf32> to vector<1x2x1xf32>
    %cst_28 = arith.constant dense<0.000000e+00> : vector<1xf32>
    %56 = vector.multi_reduction <add>, %55, %cst_28 [1, 2] : vector<1x2x1xf32> to vector<1xf32>
    %57 = vector.shape_cast %56 : vector<1xf32> to vector<1x1x1xf32>
    %58 = vector.extract %57[0, 0, 0] : f32 from vector<1x1x1xf32>
    %59 = vector.broadcast %58 : f32 to vector<1x1xf32>
    %60 = arith.addf %59, %43 : vector<1x1xf32>
    %c0_i32_29 = arith.constant 0 : i32
    %61 = vector.broadcast %c0_i32_29 : i32 to vector<2x2xi32>
    %62 = arith.cmpi eq, %29, %61 : vector<2x2xi32>
    %cst_30 = arith.constant 0.000000e+00 : f32
    %63 = vector.shape_cast %60 : vector<1x1xf32> to vector<1x1xf32>
    %64 = vector.broadcast %63 : vector<1x1xf32> to vector<2x2xf32>
    %65 = vector.broadcast %cst_30 : f32 to vector<2x2xf32>
    %66 = arith.select %62, %64, %65 : vector<2x2xi1>, vector<2x2xf32>
    %67 = arith.addf %31, %66 : vector<2x2xf32>
    %c0_i32_31 = arith.constant 0 : i32
    %68 = vector.broadcast %c0_i32_31 : i32 to vector<2x2xi32>
    %69 = arith.cmpi eq, %30, %68 : vector<2x2xi32>
    %cst_32 = arith.constant 0.000000e+00 : f32
    %70 = vector.shape_cast %50 : vector<1x1xf32> to vector<1x1xf32>
    %71 = vector.broadcast %70 : vector<1x1xf32> to vector<2x2xf32>
    %72 = vector.broadcast %cst_32 : f32 to vector<2x2xf32>
    %73 = arith.select %69, %71, %72 : vector<2x2xi1>, vector<2x2xf32>
    %74 = arith.addf %67, %73 : vector<2x2xf32>
    %c15_i32_33 = arith.constant 15 : i32
    %75 = vector.broadcast %c15_i32_33 : i32 to vector<30x1xi32>
    %76 = arith.cmpi sge, %27, %75 : vector<30x1xi32>
    %c30_i32 = arith.constant 30 : i32
    %77 = vector.broadcast %c30_i32 : i32 to vector<30x1xi32>
    %78 = arith.cmpi slt, %27, %77 : vector<30x1xi32>
    %79 = arith.andi %76, %78 : vector<30x1xi1>
    %cst_34 = arith.constant 0.000000e+00 : f32
    %80 = vector.broadcast %cst_34 : f32 to vector<30x1xf32>
    %81 = arith.select %79, %23, %80 : vector<30x1xi1>, vector<30x1xf32>
    %82 = vector.shape_cast %81 : vector<30x1xf32> to vector<1x30x1xf32>
    %cst_35 = arith.constant dense<0.000000e+00> : vector<1xf32>
    %83 = vector.multi_reduction <add>, %82, %cst_35 [1, 2] : vector<1x30x1xf32> to vector<1xf32>
    %84 = vector.shape_cast %83 : vector<1xf32> to vector<1x1x1xf32>
    %85 = vector.extract %84[0, 0, 0] : f32 from vector<1x1x1xf32>
    %86 = vector.broadcast %85 : f32 to vector<1x1xf32>
    %cst_36 = arith.constant 0.000000e+00 : f32
    %87 = vector.broadcast %cst_36 : f32 to vector<30x1xf32>
    %88 = arith.select %79, %21, %87 : vector<30x1xi1>, vector<30x1xf32>
    %89 = vector.shape_cast %88 : vector<30x1xf32> to vector<1x30x1xf32>
    %cst_37 = arith.constant dense<0.000000e+00> : vector<1xf32>
    %90 = vector.multi_reduction <add>, %89, %cst_37 [1, 2] : vector<1x30x1xf32> to vector<1xf32>
    %91 = vector.shape_cast %90 : vector<1xf32> to vector<1x1x1xf32>
    %92 = vector.extract %91[0, 0, 0] : f32 from vector<1x1x1xf32>
    %93 = vector.broadcast %92 : f32 to vector<1x1xf32>
    %c1_i32 = arith.constant 1 : i32
    %94 = vector.broadcast %c1_i32 : i32 to vector<2x1xi32>
    %95 = arith.cmpi eq, %28, %94 : vector<2x1xi32>
    %cst_38 = arith.constant 0.000000e+00 : f32
    %96 = vector.broadcast %cst_38 : f32 to vector<2x1xf32>
    %97 = arith.select %95, %26, %96 : vector<2x1xi1>, vector<2x1xf32>
    %98 = vector.shape_cast %97 : vector<2x1xf32> to vector<1x2x1xf32>
    %cst_39 = arith.constant dense<0.000000e+00> : vector<1xf32>
    %99 = vector.multi_reduction <add>, %98, %cst_39 [1, 2] : vector<1x2x1xf32> to vector<1xf32>
    %100 = vector.shape_cast %99 : vector<1xf32> to vector<1x1x1xf32>
    %101 = vector.extract %100[0, 0, 0] : f32 from vector<1x1x1xf32>
    %102 = vector.broadcast %101 : f32 to vector<1x1xf32>
    %103 = arith.addf %102, %86 : vector<1x1xf32>
    %c1_i32_40 = arith.constant 1 : i32
    %104 = vector.broadcast %c1_i32_40 : i32 to vector<2x2xi32>
    %105 = arith.cmpi eq, %29, %104 : vector<2x2xi32>
    %cst_41 = arith.constant 0.000000e+00 : f32
    %106 = vector.shape_cast %103 : vector<1x1xf32> to vector<1x1xf32>
    %107 = vector.broadcast %106 : vector<1x1xf32> to vector<2x2xf32>
    %108 = vector.broadcast %cst_41 : f32 to vector<2x2xf32>
    %109 = arith.select %105, %107, %108 : vector<2x2xi1>, vector<2x2xf32>
    %110 = arith.addf %74, %109 : vector<2x2xf32>
    %c1_i32_42 = arith.constant 1 : i32
    %111 = vector.broadcast %c1_i32_42 : i32 to vector<2x2xi32>
    %112 = arith.cmpi eq, %30, %111 : vector<2x2xi32>
    %cst_43 = arith.constant 0.000000e+00 : f32
    %113 = vector.shape_cast %93 : vector<1x1xf32> to vector<1x1xf32>
    %114 = vector.broadcast %113 : vector<1x1xf32> to vector<2x2xf32>
    %115 = vector.broadcast %cst_43 : f32 to vector<2x2xf32>
    %116 = arith.select %112, %114, %115 : vector<2x2xi1>, vector<2x2xf32>
    %117 = arith.addf %110, %116 : vector<2x2xf32>
    %118 = arith.negf %117 : vector<2x2xf32>
    %119 = math.exp %118 : vector<2x2xf32>
    %cst_44 = arith.constant 1.000000e+00 : f32
    %120 = vector.broadcast %cst_44 : f32 to vector<2x2xf32>
    %121 = arith.addf %120, %119 : vector<2x2xf32>
    %122 = arith.divf %120, %121 : vector<2x2xf32>
    %c0_45 = arith.constant 0 : index
    %c0_46 = arith.constant 0 : index
    %123 = vector.load %arg8[%c0_45, %c0_46] : memref<2x2xf32, #tpu.memory_space<vmem>>, vector<2x2xf32>
    tpu.vector_store %arg8[%c0_45, %c0_46], %122 {strides = array<i32>} : memref<2x2xf32, #tpu.memory_space<vmem>>, vector<2x2xf32>,
    return
  }
}

</mosaic_0001>

<llo_original>
// kernel: tpu_custom_call.1
$region0: #{tpu_custom_call.1}
  #allocation0 [shape = 'u32[]', space=smem, size = 0x4, offset = 0x4, fixed_abs, tag = 'smem constant byte address 0x4 - core index']
  #allocation1 [shape = 'u32[144,128]{1,0:T(1,128)}', space=vmem, size = 0x12000, scoped, tag = 'internal scratch']
  %s0 = inlined_call_operand.vmem [shape: f32[30,32], index: 0, kind: input, shape index: {}]
  %s1 = inlined_call_operand.vmem [shape: f32[30,32], index: 1, kind: input, shape index: {}]
  %s2 = inlined_call_operand.vmem [shape: f32[2,6], index: 2, kind: input, shape index: {}]
  %s3 = inlined_call_operand.vmem [shape: f32[32,64], index: 3, kind: input, shape index: {}]
  %s4 = inlined_call_operand.vmem [shape: f32[1,64], index: 4, kind: input, shape index: {}]
  %s5 = inlined_call_operand.vmem [shape: f32[64,32], index: 5, kind: input, shape index: {}]
  %s6 = inlined_call_operand.vmem [shape: f32[1,32], index: 6, kind: input, shape index: {}]
  %s7 = inlined_call_operand.vmem [shape: f32[1,32], index: 7, kind: input, shape index: {}]
  %s8 = inlined_call_operand.hbm [shape: f32[2,2], index: 8, kind: output, shape index: {}]
  %s9 = sld [smem:[#allocation0]]
  $region42: #{tpu_custom_call.1} parent=0
    _
  %s11 = ssub.s32 1, %s9
  %s12 = scalar_select 0, %s11, %s9
  $region1: #{tpu_custom_call.1} parent=0
    #allocation2 [shape = 'u8[1024]{0}', space=vmem, size = 0x400, scoped, tag = 'output window, operand 0, single buffered']
    #allocation3 [shape = 's32[1]{0}', space=sflag, size = 0x4, scoped, tag = 'scoped memory for tpu_custom_call.1']
    %13 = vsyncpa [#allocation3], 0
    // Predicated region
    $region2: #{tpu_custom_call.1} parent=1 // pred_check
      _
    $region3: #{tpu_custom_call.1} parent=1 // pred_check_branch
      %15 = sbr.rel (0) target = $region5
    $region4: #{tpu_custom_call.1} parent=1 // pred_region
      _
    $region5: #{tpu_custom_call.1} parent=1 // pred_fallthru
      _
    // Predicated region
    $region6: #{tpu_custom_call.1} parent=1 // pred_check
      _
    $region7: #{tpu_custom_call.1} parent=1 // pred_check_branch
      %17 = sbr.rel (0) target = $region9
    $region8: #{tpu_custom_call.1} parent=1 // pred_region
      _
    $region9: #{tpu_custom_call.1} parent=1 // pred_fallthru
      _
    // Predicated region
    $region10: #{tpu_custom_call.1} parent=1 // pred_check
      _
    $region11: #{tpu_custom_call.1} parent=1 // pred_check_branch
      %19 = sbr.rel (0) target = $region13
    $region12: #{tpu_custom_call.1} parent=1 // pred_region
      _
    $region13: #{tpu_custom_call.1} parent=1 // pred_fallthru
      _
    // Predicated region
    $region14: #{tpu_custom_call.1} parent=1 // pred_check
      _
    $region15: #{tpu_custom_call.1} parent=1 // pred_check_branch
      %21 = sbr.rel (0) target = $region17
    $region16: #{tpu_custom_call.1} parent=1 // pred_region
      _
    $region17: #{tpu_custom_call.1} parent=1 // pred_fallthru
      _
    // Predicated region
    $region18: #{tpu_custom_call.1} parent=1 // pred_check
      _
    $region19: #{tpu_custom_call.1} parent=1 // pred_check_branch
      %23 = sbr.rel (0) target = $region21
    $region20: #{tpu_custom_call.1} parent=1 // pred_region
      _
    $region21: #{tpu_custom_call.1} parent=1 // pred_fallthru
      _
    // Predicated region
    $region22: #{tpu_custom_call.1} parent=1 // pred_check
      _
    $region23: #{tpu_custom_call.1} parent=1 // pred_check_branch
      %25 = sbr.rel (0) target = $region25
    $region24: #{tpu_custom_call.1} parent=1 // pred_region
      _
    $region25: #{tpu_custom_call.1} parent=1 // pred_fallthru
      _
    // Predicated region
    $region26: #{tpu_custom_call.1} parent=1 // pred_check
      _
    $region27: #{tpu_custom_call.1} parent=1 // pred_check_branch
      %27 = sbr.rel (0) target = $region29
    $region28: #{tpu_custom_call.1} parent=1 // pred_region
      _
    $region29: #{tpu_custom_call.1} parent=1 // pred_fallthru
      _
    // Predicated region
    $region30: #{tpu_custom_call.1} parent=1 // pred_check
      _
    $region31: #{tpu_custom_call.1} parent=1 // pred_check_branch
      %29 = sbr.rel (0) target = $region33
    $region32: #{tpu_custom_call.1} parent=1 // pred_region
      _
    $region33: #{tpu_custom_call.1} parent=1 // pred_fallthru
      _
    %v30 = vld [vmem:[%s0] sm:$0xff]
    %v31 = vld [vmem:[%s0 + $0x8] sm:$0xff]
    %v32 = vld [vmem:[%s0 + $0x10] sm:$0xff]
    %v33 = vld [vmem:[%s0 + $0x18] sm:$0x3f]
    %v34 = vld [vmem:[%s1] sm:$0xff]
    %v35 = vld [vmem:[%s1 + $0x8] sm:$0xff]
    %v36 = vld [vmem:[%s1 + $0x10] sm:$0xff]
    %v37 = vld [vmem:[%s1 + $0x18] sm:$0x3f]
    %v38 = vmul.f32 %v30, %v34
    %v39 = vmul.f32 %v31, %v35
    %v40 = vmul.f32 %v32, %v36
    %v41 = vmul.f32 %v33, %v37
    %v42 = vld [vmem:[%s3] sm:$0xff]
    %v43 = vld [vmem:[%s3 + $0x8] sm:$0xff]
    %v44 = vld [vmem:[%s3 + $0x10] sm:$0xff]
    %v45 = vld [vmem:[%s3 + $0x18] sm:$0xff]
    %v46 = vld [vmem:[%s4] sm:$0x1]
    %v48 = vlaneseq
    %v49 = vshrl.u32 %v48, 7
    %v50 = vsub.s32 0, %v49
    %v51 = vrot.slane %v46, %v50
    %vm53 = vcmask 261120
    %v55 = vsel %vm53, %v38, 0
    %v58 = vsel %vm53, %v39, 0
    %v61 = vsel %vm53, %v40, 0
    %v64 = vsel %vm53, %v41, 0
    %66 = vmatprep.subr.mxu0 0.0
    %67 = vmatpush1.msra.mxu0 %v42
    %68 = vmatprep.subr.mxu0 0.0
    %69 = vmatpush1.msra.mxu0 %v43
    %70 = vmatprep.subr.mxu0 0.0
    %71 = vmatpush1.msra.mxu0 %v44
    %72 = vmatprep.subr.mxu0 0.0
    %73 = vmatpush1.msra.mxu0 %v45
    %74 = vmatprep.subr.mxu0 0.0
    %75 = vmatpush1.msra.mxu0 0.0
    %76 = vmatprep.subr.mxu0 0.0
    %77 = vmatpush1.msra.mxu0 0.0
    %78 = vmatprep.subr.mxu0 0.0
    %79 = vmatpush1.msra.mxu0 0.0
    %80 = vmatprep.subr.mxu0 0.0
    %81 = vmatpush1.msra.mxu0 0.0
    %82 = vmatprep.subr.mxu0 0.0
    %83 = vmatpush1.msra.mxu0 0.0
    %84 = vmatprep.subr.mxu0 0.0
    %85 = vmatpush1.msra.mxu0 0.0
    %86 = vmatprep.subr.mxu0 0.0
    %87 = vmatpush1.msra.mxu0 0.0
    %88 = vmatprep.subr.mxu0 0.0
    %89 = vmatpush1.msra.mxu0 0.0
    %90 = vmatprep.subr.mxu0 0.0
    %91 = vmatpush1.msra.mxu0 0.0
    %92 = vmatprep.subr.mxu0 0.0
    %93 = vmatpush1.msra.mxu0 0.0
    %94 = vmatprep.subr.mxu0 0.0
    %95 = vmatpush1.msra.mxu0 0.0
    %96 = vmatprep.subr.mxu0 0.0
    %97 = vmatpush1.msra.mxu0 0.0
    %98 = vmatprep.subr.mxu0 0.0
    %99 = vmatpush1.msra.mxu0 0.0
    %100 = vmatprep.subr.mxu0 0.0
    %101 = vmatpush1.msra.mxu0 0.0
    %102 = vmatprep.subr.mxu0 0.0
    %103 = vmatpush1.msra.mxu0 0.0
    %104 = vmatprep.subr.mxu0 0.0
    %105 = vmatpush1.msra.mxu0 0.0
    %106 = vmatprep.subr.mxu0 0.0
    %107 = vmatpush1.msra.mxu0 0.0
    %108 = vmatprep.subr.mxu0 0.0
    %109 = vmatpush1.msra.mxu0 0.0
    %110 = vmatprep.subr.mxu0 0.0
    %111 = vmatpush1.msra.mxu0 0.0
    %112 = vmatprep.subr.mxu0 0.0
    %113 = vmatpush1.msra.mxu0 0.0
    %114 = vmatprep.subr.mxu0 0.0
    %115 = vmatpush1.msra.mxu0 0.0
    %116 = vmatprep.subr.mxu0 0.0
    %117 = vmatpush1.msra.mxu0 0.0
    %118 = vmatprep.subr.mxu0 0.0
    %119 = vmatpush1.msra.mxu0 0.0
    %120 = vmatprep.subr.mxu0 0.0
    %121 = vmatpush1.msra.mxu0 0.0
    %122 = vmatprep.subr.mxu0 0.0
    %123 = vmatpush1.msra.mxu0 0.0
    %124 = vmatprep.subr.mxu0 0.0
    %125 = vmatpush1.msra.mxu0 0.0
    %126 = vmatprep.subr.mxu0 0.0
    %127 = vmatpush1.msra.mxu0 0.0
    %128 = vmatprep.subr.mxu0 0.0
    %129 = vmatpush1.msra.mxu0 0.0
    %130 = vmatprep.mubr.f32.mxu0 0.0
    %131 = vmatmul.mubr.f32.gmra.mrb[0].mxu0 %v55
    %v132 = vpop.f32.mrb[0].mxu0
    %v133 = vadd.f32 %v51, %v132
    %v134 = vpop.f32.mrb[0].mxu0
    %135 = vmatprep.mubr.f32.mxu0 0.0
    %136 = vmatmul.mubr.f32.gmra.mrb[0].mxu0 %v58
    %v137 = vpop.f32.mrb[0].mxu0
    %v138 = vadd.f32 %v51, %v137
    %v139 = vpop.f32.mrb[0].mxu0
    %140 = vmatprep.mubr.f32.mxu0 0.0
    %141 = vmatmul.mubr.f32.gmra.mrb[0].mxu0 %v61
    %v142 = vpop.f32.mrb[0].mxu0
    %v143 = vadd.f32 %v51, %v142
    %v144 = vpop.f32.mrb[0].mxu0
    %145 = vmatprep.mubr.f32.mxu0 0.0
    %146 = vmatmul.mubr.f32.gmra.mrb[0].mxu0 %v64
    %v147 = vpop.f32.mrb[0].mxu0
    %v148 = vadd.f32 %v51, %v147
    %v149 = vpop.f32.mrb[0].mxu0
    %150 = vdwg.mxu0
    %v151 = vmax.f32 %v133, 0.0
    %v152 = vmax.f32 %v138, 0.0
    %v153 = vmax.f32 %v143, 0.0
    %v154 = vmax.f32 %v148, 0.0
    %v155 = vld [vmem:[%s5] sm:$0xff]
    %v156 = vld [vmem:[%s5 + $0x8] sm:$0xff]
    %v157 = vld [vmem:[%s5 + $0x10] sm:$0xff]
    %v158 = vld [vmem:[%s5 + $0x18] sm:$0xff]
    %v159 = vld [vmem:[%s5 + $0x20] sm:$0xff]
    %v160 = vld [vmem:[%s5 + $0x28] sm:$0xff]
    %v161 = vld [vmem:[%s5 + $0x30] sm:$0xff]
    %v162 = vld [vmem:[%s5 + $0x38] sm:$0xff]
    %v163 = vld [vmem:[%s6] sm:$0x1]
    %v165 = vlaneseq
    %v166 = vshrl.u32 %v165, 7
    %v167 = vsub.s32 0, %v166
    %v168 = vrot.slane %v163, %v167
    %vm170 = vcmask 523264
    %v172 = vsel %vm170, %v151, 0
    %v175 = vsel %vm170, %v152, 0
    %v178 = vsel %vm170, %v153, 0
    %v181 = vsel %vm170, %v154, 0
    %183 = vmatprep.subr.mxu0 0.0
    %184 = vmatpush1.msra.mxu0 %v155
    %185 = vmatprep.subr.mxu0 0.0
    %186 = vmatpush1.msra.mxu0 %v156
    %187 = vmatprep.subr.mxu0 0.0
    %188 = vmatpush1.msra.mxu0 %v157
    %189 = vmatprep.subr.mxu0 0.0
    %190 = vmatpush1.msra.mxu0 %v158
    %191 = vmatprep.subr.mxu0 0.0
    %192 = vmatpush1.msra.mxu0 %v159
    %193 = vmatprep.subr.mxu0 0.0
    %194 = vmatpush1.msra.mxu0 %v160
    %195 = vmatprep.subr.mxu0 0.0
    %196 = vmatpush1.msra.mxu0 %v161
    %197 = vmatprep.subr.mxu0 0.0
    %198 = vmatpush1.msra.mxu0 %v162
    %199 = vmatprep.subr.mxu0 0.0
    %200 = vmatpush1.msra.mxu0 0.0
    %201 = vmatprep.subr.mxu0 0.0
    %202 = vmatpush1.msra.mxu0 0.0
    %203 = vmatprep.subr.mxu0 0.0
    %204 = vmatpush1.msra.mxu0 0.0
    %205 = vmatprep.subr.mxu0 0.0
    %206 = vmatpush1.msra.mxu0 0.0
    %207 = vmatprep.subr.mxu0 0.0
    %208 = vmatpush1.msra.mxu0 0.0
    %209 = vmatprep.subr.mxu0 0.0
    %210 = vmatpush1.msra.mxu0 0.0
    %211 = vmatprep.subr.mxu0 0.0
    %212 = vmatpush1.msra.mxu0 0.0
    %213 = vmatprep.subr.mxu0 0.0
    %214 = vmatpush1.msra.mxu0 0.0
    %215 = vmatprep.subr.mxu0 0.0
    %216 = vmatpush1.msra.mxu0 0.0
    %217 = vmatprep.subr.mxu0 0.0
    %218 = vmatpush1.msra.mxu0 0.0
    %219 = vmatprep.subr.mxu0 0.0
    %220 = vmatpush1.msra.mxu0 0.0
    %221 = vmatprep.subr.mxu0 0.0
    %222 = vmatpush1.msra.mxu0 0.0
    %223 = vmatprep.subr.mxu0 0.0
    %224 = vmatpush1.msra.mxu0 0.0
    %225 = vmatprep.subr.mxu0 0.0
    %226 = vmatpush1.msra.mxu0 0.0
    %227 = vmatprep.subr.mxu0 0.0
    %228 = vmatpush1.msra.mxu0 0.0
    %229 = vmatprep.subr.mxu0 0.0
    %230 = vmatpush1.msra.mxu0 0.0
    %231 = vmatprep.subr.mxu0 0.0
    %232 = vmatpush1.msra.mxu0 0.0
    %233 = vmatprep.subr.mxu0 0.0
    %234 = vmatpush1.msra.mxu0 0.0
    %235 = vmatprep.subr.mxu0 0.0
    %236 = vmatpush1.msra.mxu0 0.0
    %237 = vmatprep.subr.mxu0 0.0
    %238 = vmatpush1.msra.mxu0 0.0
    %239 = vmatprep.subr.mxu0 0.0
    %240 = vmatpush1.msra.mxu0 0.0
    %241 = vmatprep.subr.mxu0 0.0
    %242 = vmatpush1.msra.mxu0 0.0
    %243 = vmatprep.subr.mxu0 0.0
    %244 = vmatpush1.msra.mxu0 0.0
    %245 = vmatprep.subr.mxu0 0.0
    %246 = vmatpush1.msra.mxu0 0.0
    %247 = vmatprep.mubr.f32.mxu0 0.0
    %248 = vmatmul.mubr.f32.gmra.mrb[0].mxu0 %v172
    %v249 = vpop.f32.mrb[0].mxu0
    %v250 = vadd.f32 %v168, %v249
    %v251 = vpop.f32.mrb[0].mxu0
    %252 = vmatprep.mubr.f32.mxu0 0.0
    %253 = vmatmul.mubr.f32.gmra.mrb[0].mxu0 %v175
    %v254 = vpop.f32.mrb[0].mxu0
    %v255 = vadd.f32 %v168, %v254
    %v256 = vpop.f32.mrb[0].mxu0
    %257 = vmatprep.mubr.f32.mxu0 0.0
    %258 = vmatmul.mubr.f32.gmra.mrb[0].mxu0 %v178
    %v259 = vpop.f32.mrb[0].mxu0
    %v260 = vadd.f32 %v168, %v259
    %v261 = vpop.f32.mrb[0].mxu0
    %262 = vmatprep.mubr.f32.mxu0 0.0
    %263 = vmatmul.mubr.f32.gmra.mrb[0].mxu0 %v181
    %v264 = vpop.f32.mrb[0].mxu0
    %v265 = vadd.f32 %v168, %v264
    %v266 = vpop.f32.mrb[0].mxu0
    %267 = vdwg.mxu0
    %v268 = vmax.f32 %v250, 0.0
    %v269 = vmax.f32 %v255, 0.0
    %v270 = vmax.f32 %v260, 0.0
    %v271 = vmax.f32 %v265, 0.0
    %v272 = vld [vmem:[%s7] sm:$0x1]
    %v274 = vlaneseq
    %v275 = vshrl.u32 %v274, 7
    %v276 = vsub.s32 0, %v275
    %v277 = vrot.slane %v272, %v276
    %v279 = vmul.f32 %v268, %v277
    %v280 = vmul.f32 %v269, %v277
    %v281 = vmul.f32 %v270, %v277
    %v282 = vmul.f32 %v271, %v277
    %v283 = vsel %vm53, %v279, 0.0
    %284 = vadd.xlane.f32.xlu0 %v283
    %v285 = vpop.xlane.xlu0 %284
    %v286 = vsel %vm53, %v280, 0.0
    %287 = vadd.xlane.f32.xlu0 %v286
    %v288 = vpop.xlane.xlu0 %287
    %v289 = vsel %vm53, %v281, 0.0
    %290 = vadd.xlane.f32.xlu0 %v289
    %v291 = vpop.xlane.xlu0 %290
    %vm292 = vcmask 259072
    %v293 = vsel %vm292, %v282, 0.0
    %294 = vadd.xlane.f32.xlu0 %v293
    %v295 = vpop.xlane.xlu0 %294
    %v296 = vsel %vm53, %v38, 0.0
    %297 = vadd.xlane.f32.xlu0 %v296
    %v298 = vpop.xlane.xlu0 %297
    %v299 = vsel %vm53, %v39, 0.0
    %300 = vadd.xlane.f32.xlu0 %v299
    %v301 = vpop.xlane.xlu0 %300
    %v302 = vsel %vm53, %v40, 0.0
    %303 = vadd.xlane.f32.xlu0 %v302
    %v304 = vpop.xlane.xlu0 %303
    %v305 = vsel %vm292, %v41, 0.0
    %306 = vadd.xlane.f32.xlu0 %v305
    %v307 = vpop.xlane.xlu0 %306
    %v308 = vld [vmem:[%s2] sm:$0x3]
    %vm309 = vcmask 41984
    %v310 = vsel %vm309, %v308, 0.0
    %311 = vadd.xlane.f32.xlu0 %v310
    %v312 = vpop.xlane.xlu0 %311
    %v313 = vlaneseq
    %v314 = vshrl.u32 %v313, 7
    %v315 = vadd.s32 %v314, 8
    %v316 = vadd.s32 %v314, 16
    %v317 = vadd.s32 %v314, 24
    %v318 = vlaneseq
    %v319 = vand.u32 %v318, 127
    %vm320 = vcmp.ge.s32.totalorder %v314, 0
    %vm321 = vcmp.ge.s32.totalorder %v315, 0
    %vm322 = vcmp.ge.s32.totalorder %v316, 0
    %vm323 = vcmp.ge.s32.totalorder %v317, 0
    %vm324 = vcmp.lt.s32.totalorder %v314, 15
    %vm325 = vcmp.lt.s32.totalorder %v315, 15
    %vm326 = vcmp.lt.s32.totalorder %v316, 15
    %vm327 = vcmp.lt.s32.totalorder %v317, 15
    %vm328 = vmand %vm320, %vm324
    %vm329 = vmand %vm321, %vm325
    %vm330 = vmand %vm322, %vm326
    %vm331 = vmand %vm323, %vm327
    %v332 = vsel %vm328, %v298, 0.0
    %v333 = vsel %vm329, %v301, 0.0
    %v334 = vsel %vm330, %v304, 0.0
    %v335 = vsel %vm331, %v307, 0.0
    %vm336 = vcmask 7168
    %v337 = vsel %vm336, %v332, 0.0
    %v338 = vsel %vm336, %v333, 0.0
    %v339 = vadd.f32 %v337, %v338
    %v340 = vsel %vm336, %v334, 0.0
    %v341 = vadd.f32 %v339, %v340
    %vm342 = vcmask 5120
    %v343 = vsel %vm342, %v335, 0.0
    %v344 = vadd.f32 %v341, %v343
    %345 = vadd.xlane.f32.xlu0 %v344
    %v346 = vpop.xlane.xlu0 %345
    %v347 = vrot.slane %v346, 4
    %v348 = vadd.f32 %v346, %v347
    %v349 = vrot.slane %v348, 2
    %v350 = vadd.f32 %v348, %v349
    %v351 = vrot.slane %v350, 1
    %v352 = vadd.f32 %v350, %v351
    %s353 = vtos %v352
    %v354 = vstv %s353
    %v355 = vsel %vm328, %v285, 0.0
    %v356 = vsel %vm329, %v288, 0.0
    %v357 = vsel %vm330, %v291, 0.0
    %v358 = vsel %vm331, %v295, 0.0
    %v359 = vsel %vm336, %v355, 0.0
    %v360 = vsel %vm336, %v356, 0.0
    %v361 = vadd.f32 %v359, %v360
    %v362 = vsel %vm336, %v357, 0.0
    %v363 = vadd.f32 %v361, %v362
    %v364 = vsel %vm342, %v358, 0.0
    %v365 = vadd.f32 %v363, %v364
    %366 = vadd.xlane.f32.xlu0 %v365
    %v367 = vpop.xlane.xlu0 %366
    %v368 = vrot.slane %v367, 4
    %v369 = vadd.f32 %v367, %v368
    %v370 = vrot.slane %v369, 2
    %v371 = vadd.f32 %v369, %v370
    %v372 = vrot.slane %v371, 1
    %v373 = vadd.f32 %v371, %v372
    %s374 = vtos %v373
    %vm375 = vcmp.eq.s32.totalorder %v314, 0
    %v376 = vsel %vm375, %v312, 0.0
    %vm377 = vcmask 1024
    %v378 = vsel %vm377, %v376, 0.0
    %379 = vadd.xlane.f32.xlu0 %v378
    %v380 = vpop.xlane.xlu0 %379
    %v381 = vrot.slane %v380, 4
    %v382 = vadd.f32 %v380, %v381
    %v383 = vrot.slane %v382, 2
    %v384 = vadd.f32 %v382, %v383
    %v385 = vrot.slane %v384, 1
    %v386 = vadd.f32 %v384, %v385
    %s387 = vtos %v386
    %v388 = vstv %s387
    %v389 = vadd.f32 %v388, %v354
    %v390 = vsel %vm375, %v389, 0.0
    %v391 = vadd.f32 %v390, 0.0
    %vm392 = vcmp.eq.s32.totalorder %v319, 0
    %v393 = vstv %s374
    %v394 = vsel %vm392, %v393, 0.0
    %v395 = vadd.f32 %v391, %v394
    %vm396 = vcmp.ge.s32.totalorder %v314, 15
    %vm397 = vcmp.ge.s32.totalorder %v315, 15
    %vm398 = vcmp.ge.s32.totalorder %v316, 15
    %vm399 = vcmp.ge.s32.totalorder %v317, 15
    %vm400 = vcmp.lt.s32.totalorder %v314, 30
    %vm401 = vcmp.lt.s32.totalorder %v315, 30
    %vm402 = vcmp.lt.s32.totalorder %v316, 30
    %vm403 = vcmp.lt.s32.totalorder %v317, 30
    %vm404 = vmand %vm396, %vm400
    %vm405 = vmand %vm397, %vm401
    %vm406 = vmand %vm398, %vm402
    %vm407 = vmand %vm399, %vm403
    %v408 = vsel %vm404, %v298, 0.0
    %v409 = vsel %vm405, %v301, 0.0
    %v410 = vsel %vm406, %v304, 0.0
    %v411 = vsel %vm407, %v307, 0.0
    %v412 = vsel %vm336, %v408, 0.0
    %v413 = vsel %vm336, %v409, 0.0
    %v414 = vadd.f32 %v412, %v413
    %v415 = vsel %vm336, %v410, 0.0
    %v416 = vadd.f32 %v414, %v415
    %v417 = vsel %vm342, %v411, 0.0
    %v418 = vadd.f32 %v416, %v417
    %419 = vadd.xlane.f32.xlu0 %v418
    %v420 = vpop.xlane.xlu0 %419
    %v421 = vrot.slane %v420, 4
    %v422 = vadd.f32 %v420, %v421
    %v423 = vrot.slane %v422, 2
    %v424 = vadd.f32 %v422, %v423
    %v425 = vrot.slane %v424, 1
    %v426 = vadd.f32 %v424, %v425
    %s427 = vtos %v426
    %v428 = vstv %s427
    %v429 = vsel %vm404, %v285, 0.0
    %v430 = vsel %vm405, %v288, 0.0
    %v431 = vsel %vm406, %v291, 0.0
    %v432 = vsel %vm407, %v295, 0.0
    %v433 = vsel %vm336, %v429, 0.0
    %v434 = vsel %vm336, %v430, 0.0
    %v435 = vadd.f32 %v433, %v434
    %v436 = vsel %vm336, %v431, 0.0
    %v437 = vadd.f32 %v435, %v436
    %v438 = vsel %vm342, %v432, 0.0
    %v439 = vadd.f32 %v437, %v438
    %440 = vadd.xlane.f32.xlu0 %v439
    %v441 = vpop.xlane.xlu0 %440
    %v442 = vrot.slane %v441, 4
    %v443 = vadd.f32 %v441, %v442
    %v444 = vrot.slane %v443, 2
    %v445 = vadd.f32 %v443, %v444
    %v446 = vrot.slane %v445, 1
    %v447 = vadd.f32 %v445, %v446
    %s448 = vtos %v447
    %vm449 = vcmp.eq.s32.totalorder %v314, 1
    %v450 = vsel %vm449, %v312, 0.0
    %v451 = vsel %vm377, %v450, 0.0
    %452 = vadd.xlane.f32.xlu0 %v451
    %v453 = vpop.xlane.xlu0 %452
    %v454 = vrot.slane %v453, 4
    %v455 = vadd.f32 %v453, %v454
    %v456 = vrot.slane %v455, 2
    %v457 = vadd.f32 %v455, %v456
    %v458 = vrot.slane %v457, 1
    %v459 = vadd.f32 %v457, %v458
    %s460 = vtos %v459
    %v461 = vstv %s460
    %v462 = vadd.f32 %v461, %v428
    %v463 = vsel %vm449, %v462, 0.0
    %v464 = vadd.f32 %v395, %v463
    %vm465 = vcmp.eq.s32.totalorder %v319, 1
    %v466 = vstv %s448
    %v467 = vsel %vm465, %v466, 0.0
    %v468 = vadd.f32 %v464, %v467
    %v469 = vxor.u32 %v468, 2147483648
    %v470 = vmul.f32 %v469, 1.442695
    %v471 = vpow.pop %v470
    %v472 = vadd.f32 %v471, 1.0
    %v473 = vrcp.pop %v472
    %v474 = vmul.f32 1.0, %v473
    %vm475 = vcmask 9216
    %476 = vst.msk [vmem:[#allocation2] sm:$0x3] %vm475, %v474
    // Predicated region
    $region34: #{tpu_custom_call.1} parent=1 // pred_check
      _
    $region35: #{tpu_custom_call.1} parent=1 // pred_check_branch
      %478 = sbr.rel (0) target = $region37
    $region36: #{tpu_custom_call.1} parent=1 // pred_region
      %s480 = ssub.s32 32, 32
      %481 = vsyncadd [#allocation3], %s480
      %s483 = sshll.u32 [#allocation2], 4
      %s484 = int_to_ptr.vmem [resolvable:$true] %s483
      %486 = dma.vmem_to_hbm [thread:$0]  %s484, 32, %s8, [#allocation3]
    $region37: #{tpu_custom_call.1} parent=1 // pred_fallthru
      _
    // Predicated region
    $region38: #{tpu_custom_call.1} parent=1 // pred_check
      _
    $region39: #{tpu_custom_call.1} parent=1 // pred_check_branch
      %488 = sbr.rel (0) target = $region41
    $region40: #{tpu_custom_call.1} parent=1 // pred_region
      %489 = dma.done [#allocation3], 32
    $region41: #{tpu_custom_call.1} parent=1 // pred_fallthru
      _
    %490 = vsyncpa [#allocation3], 1

</llo_original>
